<compile_context>
chip_gen: v5e
topology: v5e:2x2
jax: 0.10.0
libtpu: 0.0.40
codegen_flags: <defaults>
</compile_context>

<pallas_src>
import functools

import jax
import jax.numpy as jnp
from jax import lax
from jax.experimental import pallas as pl
from jax.experimental.pallas import tpu as pltpu


def _clip_infonce_kernel(scale_ref, v_ref, t_ref, o_ref, *, mxu_dtype):
    scale = scale_ref[0, 0]                      # SMEM scalar (traced)

    v = v_ref[...].astype(jnp.float32)           # (bs, d)
    t = t_ref[...].astype(jnp.float32)           # (bs, d)

    # F.normalize(p=2, dim=1): x / max(||x||, 1e-12)  ==  x * rsqrt(max(sum x^2, 1e-24))
    # Fold `scale` into the v side only (scale applies once per logit).
    v_inv = lax.rsqrt(jnp.maximum(jnp.sum(v * v, axis=1, keepdims=True), 1e-24)) * scale
    t_inv = lax.rsqrt(jnp.maximum(jnp.sum(t * t, axis=1, keepdims=True), 1e-24))
    v_s = v * v_inv                              # scale * normalize(v)
    t_n = t * t_inv                              # normalize(t)

    # Diagonal logits[i, i] = <v_s_i, t_n_i>  -- computed from the (bs, d)
    # tiles directly (VPU mul + lane reduce), no iota mask over bs x bs.
    diag_sum = jnp.sum(v_s * t_n)

    # logits = v_s @ t_n^T  (contract over d) on the MXU, f32 accumulate.
    logits = lax.dot_general(
        v_s.astype(mxu_dtype), t_n.astype(mxu_dtype),
        dimension_numbers=(((1,), (1,)), ((), ())),
        preferred_element_type=jnp.float32)      # (bs, bs)

    bs = logits.shape[0]

    # Shared-global-max logsumexp: one exp pass serves both row and column LSE.
    m = jnp.max(logits)
    e = jnp.exp(logits - m)
    lse_r_sum = jnp.sum(jnp.log(jnp.sum(e, axis=1, keepdims=True))) + bs * m
    lse_c_sum = jnp.sum(jnp.log(jnp.sum(e, axis=0, keepdims=True))) + bs * m

    # Symmetric cross-entropy with labels = arange(bs):
    #   loss_i = mean_i [lse_row_i  - logits[i, i]]
    #   loss_t = mean_i [lse_col_i  - logits[i, i]]
    inv_bs = 1.0 / float(bs)
    loss_i = (lse_r_sum - diag_sum) * inv_bs
    loss_t = (lse_c_sum - diag_sum) * inv_bs

    o_ref[0, 0] = (loss_i + loss_t) * 0.5


def clip_infonce_loss(emb_v, emb_t, logit_scale=None, temperature=0.1,
                      mxu_dtype=jnp.bfloat16):
    """Pallas TPU implementation of ClipInfoCELoss.forward.

    emb_v: (bs, d), emb_t: (bs, d).  Returns scalar f32 loss.
    logit_scale may be None (use 1/temperature), a python float, or a traced
    JAX scalar (learned CLIP logit_scale) -- it is passed at runtime via SMEM.
    """
    assert emb_v.shape == emb_t.shape and emb_v.ndim == 2
    bs, d = emb_v.shape

    if logit_scale is None:
        scale = jnp.float32(1.0) / jnp.asarray(temperature, dtype=jnp.float32)
    else:
        scale = jnp.asarray(logit_scale, dtype=jnp.float32)
    scale = jnp.reshape(scale, (1, 1))

    # Lane alignment: pad the feature dim to a multiple of 128 with zeros.
    # Zero columns do not change row norms or pairwise dot products.
    d_pad = (-d) % 128
    if d_pad:
        emb_v = jnp.pad(emb_v, ((0, 0), (0, d_pad)))
        emb_t = jnp.pad(emb_t, ((0, 0), (0, d_pad)))

    kernel = functools.partial(_clip_infonce_kernel, mxu_dtype=mxu_dtype)

    out = pl.pallas_call(
        kernel,
        out_shape=jax.ShapeDtypeStruct((1, 1), jnp.float32),
        in_specs=[
            pl.BlockSpec(memory_space=pltpu.MemorySpace.SMEM),   # scale (1,1)
            pl.BlockSpec(memory_space=pltpu.MemorySpace.VMEM),   # emb_v
            pl.BlockSpec(memory_space=pltpu.MemorySpace.VMEM),   # emb_t
        ],
        out_specs=pl.BlockSpec(memory_space=pltpu.MemorySpace.SMEM),
    )(scale, emb_v, emb_t)
    return out[0, 0]


def _reference_loss(emb_v, emb_t, logit_scale=None, temperature=0.1):
    # Pure-JAX reference matching the PyTorch module.
    v = emb_v / jnp.maximum(jnp.linalg.norm(emb_v, axis=1, keepdims=True), 1e-12)
    t = emb_t / jnp.maximum(jnp.linalg.norm(emb_t, axis=1, keepdims=True), 1e-12)
    scale = (1.0 / temperature) if logit_scale is None else logit_scale
    logits = (v @ t.T) * scale
    lse_r = jax.nn.logsumexp(logits, axis=1)
    lse_c = jax.nn.logsumexp(logits, axis=0)
    diag = jnp.diagonal(logits)
    loss_i = jnp.mean(lse_r - diag)
    loss_t = jnp.mean(lse_c - diag)
    return (loss_i + loss_t) / 2.0


if __name__ == "__main__":
    key = jax.random.PRNGKey(0)
    k1, k2, k3, k4 = jax.random.split(key, 4)

    # (8, 128): sublane/lane aligned toy size.
    bs, d = 8, 128
    emb_v = jax.random.normal(k1, (bs, d), dtype=jnp.float32)
    emb_t = jax.random.normal(k2, (bs, d), dtype=jnp.float32)
    ref = _reference_loss(emb_v, emb_t, temperature=0.1)

    # 1) exact path (f32 MXU operands): tight tolerance.
    loss_f32 = jax.block_until_ready(
        clip_infonce_loss(emb_v, emb_t, temperature=0.1, mxu_dtype=jnp.float32))
    assert jnp.allclose(loss_f32, ref, atol=1e-4, rtol=1e-4), (loss_f32, ref)

    # 2) fast path (bf16 MXU operands, f32 accumulate): loose tolerance.
    loss_bf16 = jax.block_until_ready(
        clip_infonce_loss(emb_v, emb_t, temperature=0.1, mxu_dtype=jnp.bfloat16))
    assert jnp.allclose(loss_bf16, ref, atol=2e-2, rtol=2e-2), (loss_bf16, ref)

    # 3) learned (traced) logit_scale + non-128 feature dim (exercises padding).
    bs2, d2 = 8, 32
    ev2 = jax.random.normal(k3, (bs2, d2), dtype=jnp.float32)
    et2 = jax.random.normal(k4, (bs2, d2), dtype=jnp.float32)
    logit_scale = jnp.float32(14.3)
    loss_ls = jax.block_until_ready(
        clip_infonce_loss(ev2, et2, logit_scale=logit_scale, mxu_dtype=jnp.float32))
    ref_ls = _reference_loss(ev2, et2, logit_scale=logit_scale)
    assert jnp.allclose(loss_ls, ref_ls, atol=1e-4, rtol=1e-4), (loss_ls, ref_ls)

    print("KERNEL_OK")
</pallas_src>

<mosaic_0001>
module attributes {stable_mosaic.version = 11 : i64} {
  func.func @_clip_infonce_kernel(%arg0: memref<1x1xf32, #tpu.memory_space<smem>>, %arg1: memref<8x128xf32, #tpu.memory_space<vmem>>, %arg2: memref<8x128xf32, #tpu.memory_space<vmem>>, %arg3: memref<1x1xf32, #tpu.memory_space<smem>>) attributes {dimension_semantics = [], scalar_prefetch = 0 : i64, scratch_operands = 0 : i64, tpu.core_type = #tpu.core_type<tc>} {
    %c0 = arith.constant 0 : index
    %c0_0 = arith.constant 0 : index
    %0 = memref.load %arg0[%c0, %c0_0] : memref<1x1xf32, #tpu.memory_space<smem>>
    %c0_1 = arith.constant 0 : index
    %c0_2 = arith.constant 0 : index
    %1 = vector.load %arg1[%c0_1, %c0_2] : memref<8x128xf32, #tpu.memory_space<vmem>>, vector<8x128xf32>
    %c0_3 = arith.constant 0 : index
    %c0_4 = arith.constant 0 : index
    %2 = vector.load %arg2[%c0_3, %c0_4] : memref<8x128xf32, #tpu.memory_space<vmem>>, vector<8x128xf32>
    %3 = arith.mulf %1, %1 : vector<8x128xf32>
    %cst = arith.constant dense<0.000000e+00> : vector<8xf32>
    %4 = vector.multi_reduction <add>, %3, %cst [1] : vector<8x128xf32> to vector<8xf32>
    %5 = vector.shape_cast %4 : vector<8xf32> to vector<8x1xf32>
    %cst_5 = arith.constant 1.000000e-24 : f32
    %6 = vector.broadcast %cst_5 : f32 to vector<8x1xf32>
    %7 = arith.maximumf %5, %6 : vector<8x1xf32>
    %8 = math.rsqrt %7 : vector<8x1xf32>
    %9 = vector.broadcast %0 : f32 to vector<8x1xf32>
    %10 = arith.mulf %8, %9 : vector<8x1xf32>
    %11 = arith.mulf %2, %2 : vector<8x128xf32>
    %cst_6 = arith.constant dense<0.000000e+00> : vector<8xf32>
    %12 = vector.multi_reduction <add>, %11, %cst_6 [1] : vector<8x128xf32> to vector<8xf32>
    %13 = vector.shape_cast %12 : vector<8xf32> to vector<8x1xf32>
    %cst_7 = arith.constant 1.000000e-24 : f32
    %14 = vector.broadcast %cst_7 : f32 to vector<8x1xf32>
    %15 = arith.maximumf %13, %14 : vector<8x1xf32>
    %16 = math.rsqrt %15 : vector<8x1xf32>
    %17 = vector.broadcast %10 : vector<8x1xf32> to vector<8x128xf32>
    %18 = arith.mulf %1, %17 : vector<8x128xf32>
    %19 = vector.broadcast %16 : vector<8x1xf32> to vector<8x128xf32>
    %20 = arith.mulf %2, %19 : vector<8x128xf32>
    %21 = arith.mulf %18, %20 : vector<8x128xf32>
    %22 = vector.shape_cast %21 : vector<8x128xf32> to vector<1x8x128xf32>
    %cst_8 = arith.constant dense<0.000000e+00> : vector<1xf32>
    %23 = vector.multi_reduction <add>, %22, %cst_8 [1, 2] : vector<1x8x128xf32> to vector<1xf32>
    %24 = vector.shape_cast %23 : vector<1xf32> to vector<1x1x1xf32>
    %25 = vector.extract %24[0, 0, 0] : f32 from vector<1x1x1xf32>
    %cst_9 = arith.constant dense<0.000000e+00> : vector<8x8xf32>
    %26 = tpu.matmul %18, %20, %cst_9 {dimension_numbers = #tpu.dot_dimension_numbers<[1], [1], [0], [0], [0, 0, 1, 0], [], []>} : vector<8x128xf32>, vector<8x128xf32>, vector<8x8xf32> -> vector<8x8xf32>
    %27 = vector.shape_cast %26 : vector<8x8xf32> to vector<1x8x8xf32>
    %cst_10 = arith.constant dense<0xFF800000> : vector<1xf32>
    %28 = vector.multi_reduction <maximumf>, %27, %cst_10 [1, 2] : vector<1x8x8xf32> to vector<1xf32>
    %29 = vector.shape_cast %28 : vector<1xf32> to vector<1x1x1xf32>
    %30 = vector.extract %29[0, 0, 0] : f32 from vector<1x1x1xf32>
    %31 = vector.broadcast %30 : f32 to vector<8x8xf32>
    %32 = arith.subf %26, %31 : vector<8x8xf32>
    %33 = math.exp %32 : vector<8x8xf32>
    %cst_11 = arith.constant dense<0.000000e+00> : vector<8xf32>
    %34 = vector.multi_reduction <add>, %33, %cst_11 [1] : vector<8x8xf32> to vector<8xf32>
    %35 = vector.shape_cast %34 : vector<8xf32> to vector<8x1xf32>
    %36 = math.log %35 : vector<8x1xf32>
    %37 = vector.shape_cast %36 : vector<8x1xf32> to vector<1x8x1xf32>
    %cst_12 = arith.constant dense<0.000000e+00> : vector<1xf32>
    %38 = vector.multi_reduction <add>, %37, %cst_12 [1, 2] : vector<1x8x1xf32> to vector<1xf32>
    %39 = vector.shape_cast %38 : vector<1xf32> to vector<1x1x1xf32>
    %40 = vector.extract %39[0, 0, 0] : f32 from vector<1x1x1xf32>
    %cst_13 = arith.constant 8.000000e+00 : f32
    %41 = arith.mulf %cst_13, %30 : f32
    %42 = arith.addf %40, %41 : f32
    %cst_14 = arith.constant dense<0.000000e+00> : vector<8xf32>
    %43 = vector.multi_reduction <add>, %33, %cst_14 [0] : vector<8x8xf32> to vector<8xf32>
    %44 = vector.shape_cast %43 : vector<8xf32> to vector<1x8xf32>
    %45 = math.log %44 : vector<1x8xf32>
    %46 = vector.shape_cast %45 : vector<1x8xf32> to vector<1x1x8xf32>
    %cst_15 = arith.constant dense<0.000000e+00> : vector<1xf32>
    %47 = vector.multi_reduction <add>, %46, %cst_15 [1, 2] : vector<1x1x8xf32> to vector<1xf32>
    %48 = vector.shape_cast %47 : vector<1xf32> to vector<1x1x1xf32>
    %49 = vector.extract %48[0, 0, 0] : f32 from vector<1x1x1xf32>
    %cst_16 = arith.constant 8.000000e+00 : f32
    %50 = arith.mulf %cst_16, %30 : f32
    %51 = arith.addf %49, %50 : f32
    %52 = arith.subf %42, %25 : f32
    %cst_17 = arith.constant 1.250000e-01 : f32
    %53 = arith.mulf %52, %cst_17 : f32
    %54 = arith.subf %51, %25 : f32
    %cst_18 = arith.constant 1.250000e-01 : f32
    %55 = arith.mulf %54, %cst_18 : f32
    %56 = arith.addf %53, %55 : f32
    %cst_19 = arith.constant 5.000000e-01 : f32
    %57 = arith.mulf %56, %cst_19 : f32
    %c0_20 = arith.constant 0 : index
    %c0_21 = arith.constant 0 : index
    %58 = memref.load %arg3[%c0_20, %c0_21] : memref<1x1xf32, #tpu.memory_space<smem>>
    memref.store %57, %arg3[%c0_20, %c0_21] : memref<1x1xf32, #tpu.memory_space<smem>>
    return
  }
}

</mosaic_0001>

<llo_original>
// kernel: tpu_custom_call.1
$region0: #{tpu_custom_call.1}
  #allocation0 [shape = 'u32[]', space=smem, size = 0x4, offset = 0x4, fixed_abs, tag = 'smem constant byte address 0x4 - core index']
  #allocation1 [shape = 'u32[72,128]{1,0:T(1,128)}', space=vmem, size = 0x9000, scoped, tag = 'internal scratch']
  #allocation2 [shape = 'f32[1,1]{1,0:T(1,128)S(6)}', space=smem, size = 0x200, scoped, tag = 'scoped memory for tpu_custom_call.1']
  %s0 = inlined_call_operand.<no memory space> [shape: f32[1,1], index: 0, kind: input, shape index: {}]
  %s1 = inlined_call_operand.hbm [shape: f32[8,128], index: 1, kind: input, shape index: {}]
  %s2 = inlined_call_operand.hbm [shape: f32[8,128], index: 2, kind: input, shape index: {}]
  %s3 = inlined_call_operand.hbm [shape: f32[1,1], index: 3, kind: output, shape index: {}]
  %s4 = sld [smem:[#allocation0]]
  $region30: #{tpu_custom_call.1} parent=0
    _
  %s6 = ssub.s32 1, %s4
  %s7 = scalar_select 0, %s6, %s4
  %8 = sst [smem:[#allocation2]] %s0
  $region1: #{tpu_custom_call.1} parent=0
    #allocation3 [shape = 'u8[4096]{0}', space=vmem, size = 0x1000, scoped, tag = 'input window, operand 1, single buffered']
    #allocation4 [shape = 's32[1]{0}', space=sflag, size = 0x4, scoped, tag = 'scoped memory for tpu_custom_call.1']
    #allocation5 [shape = 's32[1]{0}', space=sflag, size = 0x4, scoped, tag = 'scoped memory for tpu_custom_call.1']
    #allocation6 [shape = 'u8[4096]{0}', space=vmem, size = 0x1000, scoped, tag = 'input window, operand 2, single buffered']
    #allocation7 [shape = 's32[1]{0}', space=sflag, size = 0x4, scoped, tag = 'scoped memory for tpu_custom_call.1']
    #allocation8 [shape = 'u8[512]{0}', space=smem, size = 0x200, scoped, tag = 'output window, operand 0, single buffered']
    %9 = vsyncpa [#allocation4], 0
    %10 = vsyncpa [#allocation7], 0
    %11 = vsyncpa [#allocation5], 0
    // Predicated region
    $region2: #{tpu_custom_call.1} parent=1 // pred_check
      _
    $region3: #{tpu_custom_call.1} parent=1 // pred_check_branch
      %13 = sbr.rel (0) target = $region5
    $region4: #{tpu_custom_call.1} parent=1 // pred_region
      _
    $region5: #{tpu_custom_call.1} parent=1 // pred_fallthru
      _
    // Predicated region
    $region6: #{tpu_custom_call.1} parent=1 // pred_check
      _
    $region7: #{tpu_custom_call.1} parent=1 // pred_check_branch
      %15 = sbr.rel (0) target = $region9
    $region8: #{tpu_custom_call.1} parent=1 // pred_region
      %17 = vsyncadd [#allocation4], 0
      %s19 = sshll.u32 %s1, 4
      %s20 = int_to_ptr.hbm [resolvable:$true] %s19
      %s21 = sshll.u32 [#allocation3], 4
      %s22 = int_to_ptr.vmem [resolvable:$true] %s21
      %24 = dma.hbm_to_vmem [thread:$0]  %s20, 128, %s22, [#allocation4]
    $region9: #{tpu_custom_call.1} parent=1 // pred_fallthru
      _
    // Predicated region
    $region10: #{tpu_custom_call.1} parent=1 // pred_check
      _
    $region11: #{tpu_custom_call.1} parent=1 // pred_check_branch
      %26 = sbr.rel (0) target = $region13
    $region12: #{tpu_custom_call.1} parent=1 // pred_region
      %28 = vsyncadd [#allocation7], 0
      %s30 = sshll.u32 %s2, 4
      %s31 = int_to_ptr.hbm [resolvable:$true] %s30
      %s32 = sshll.u32 [#allocation6], 4
      %s33 = int_to_ptr.vmem [resolvable:$true] %s32
      %35 = dma.hbm_to_vmem [thread:$0]  %s31, 128, %s33, [#allocation7]
    $region13: #{tpu_custom_call.1} parent=1 // pred_fallthru
      _
    // Predicated region
    $region14: #{tpu_custom_call.1} parent=1 // pred_check
      _
    $region15: #{tpu_custom_call.1} parent=1 // pred_check_branch
      %37 = sbr.rel (0) target = $region17
    $region16: #{tpu_custom_call.1} parent=1 // pred_region
      %39 = dma.done [#allocation4], 128
    $region17: #{tpu_custom_call.1} parent=1 // pred_fallthru
      _
    // Predicated region
    $region18: #{tpu_custom_call.1} parent=1 // pred_check
      _
    $region19: #{tpu_custom_call.1} parent=1 // pred_check_branch
      %41 = sbr.rel (0) target = $region21
    $region20: #{tpu_custom_call.1} parent=1 // pred_region
      %43 = dma.done [#allocation7], 128
    $region21: #{tpu_custom_call.1} parent=1 // pred_fallthru
      _
    %s44 = sld [smem:[#allocation2]]
    %v45 = vld [vmem:[#allocation3] sm:$0xff]
    %v46 = vld [vmem:[#allocation6] sm:$0xff]
    %v47 = vmul.f32 %v45, %v45
    %48 = vadd.xlane.f32.xlu0 %v47
    %v49 = vpop.xlane.xlu0 %48
    %v50 = vmax.f32 %v49, 1e-24
    %v51 = vrsqrt.pop %v50
    %v52 = vmul.f32 %v51, %v50
    %v53 = vmul.f32 %v52, %v51
    %v54 = vmul.f32 0.5, %v53
    %v55 = vsub.f32 1.5, %v54
    %v56 = vmul.f32 %v51, %v55
    %vm57 = vweird.f32 %v50
    %vm58 = vweird.f32 %v51
    %vm59 = vmor %vm57, %vm58
    %v60 = vsel %vm59, %v51, %v56
    %v61 = vstv %s44
    %v62 = vmul.f32 %v60, %v61
    %v63 = vmul.f32 %v46, %v46
    %64 = vadd.xlane.f32.xlu0 %v63
    %v65 = vpop.xlane.xlu0 %64
    %v66 = vmax.f32 %v65, 1e-24
    %v67 = vrsqrt.pop %v66
    %v68 = vmul.f32 %v67, %v66
    %v69 = vmul.f32 %v68, %v67
    %v70 = vmul.f32 0.5, %v69
    %v71 = vsub.f32 1.5, %v70
    %v72 = vmul.f32 %v67, %v71
    %vm73 = vweird.f32 %v66
    %vm74 = vweird.f32 %v67
    %vm75 = vmor %vm73, %vm74
    %v76 = vsel %vm75, %v67, %v72
    %v77 = vmul.f32 %v45, %v62
    %v78 = vmul.f32 %v46, %v76
    %v79 = vmul.f32 %v77, %v78
    %80 = vadd.xlane.f32.xlu0 %v79
    %v81 = vpop.xlane.xlu0 %80
    %v82 = vrot.slane %v81, 4
    %v83 = vadd.f32 %v81, %v82
    %v84 = vrot.slane %v83, 2
    %v85 = vadd.f32 %v83, %v84
    %v86 = vrot.slane %v85, 1
    %v87 = vadd.f32 %v85, %v86
    %s88 = vtos %v87
    %89 = vmatpush.xpose.msra.mxu0 0.0
    %90 = vmatpush.xpose.msra.mxu0 0.0
    %91 = vmatpush.xpose.msra.mxu0 0.0
    %92 = vmatpush.xpose.msra.mxu0 0.0
    %93 = vmatpush.xpose.msra.mxu0 0.0
    %94 = vmatpush.xpose.msra.mxu0 0.0
    %95 = vmatpush.xpose.msra.mxu0 0.0
    %96 = vmatpush.xpose.msra.mxu0 0.0
    %97 = vmatpush.xpose.msra.mxu0 0.0
    %98 = vmatpush.xpose.msra.mxu0 0.0
    %99 = vmatpush.xpose.msra.mxu0 0.0
    %100 = vmatpush.xpose.msra.mxu0 0.0
    %101 = vmatpush.xpose.msra.mxu0 0.0
    %102 = vmatpush.xpose.msra.mxu0 0.0
    %103 = vmatpush.xpose.msra.mxu0 0.0
    %104 = vmatpush.xpose.msra.mxu0 %v78
    %105 = vmatmul.f32.gmra.mxu0 %v77
    %v106 = vpop.f32.mrf.mxu0
    %v107 = vadd.f32 0.0, %v106
    %108 = vdwg.mxu0
    %vm109 = vcmask 64512
    %v110 = vsel %vm109, %v107, -inf
    %111 = vmax.xlane.f32.xlu0 %v110
    %v112 = vpop.xlane.xlu0 %111
    %v113 = vrot.slane %v112, 4
    %v114 = vmax.f32 %v112, %v113
    %v115 = vrot.slane %v114, 2
    %v116 = vmax.f32 %v114, %v115
    %v117 = vrot.slane %v116, 1
    %v118 = vmax.f32 %v116, %v117
    %s119 = vtos %v118
    %v120 = vstv %s119
    %v121 = vsub.f32 %v107, %v120
    %v122 = vmul.f32 %v121, 1.442695
    %v123 = vpow.pop %v122
    %v124 = vsel %vm109, %v123, 0.0
    %125 = vadd.xlane.f32.xlu0 %v124
    %v126 = vpop.xlane.xlu0 %125
    %v127 = vlog2.pop %v126
    %v128 = vmul.f32 %v127, 0.6931472
    %vm129 = vcmask 7168
    %v130 = vsel %vm129, %v128, 0.0
    %131 = vadd.xlane.f32.xlu0 %v130
    %v132 = vpop.xlane.xlu0 %131
    %v133 = vrot.slane %v132, 4
    %v134 = vadd.f32 %v132, %v133
    %v135 = vrot.slane %v134, 2
    %v136 = vadd.f32 %v134, %v135
    %v137 = vrot.slane %v136, 1
    %v138 = vadd.f32 %v136, %v137
    %s139 = vtos %v138
    %s140 = smul.f32 %s119, 8.0
    %s141 = sadd.f32 %s139, %s140
    %v142 = vrot.slane %v124, 4
    %v143 = vadd.f32 %v124, %v142
    %v144 = vrot.slane %v143, 2
    %v145 = vadd.f32 %v143, %v144
    %v146 = vrot.slane %v145, 1
    %v147 = vadd.f32 %v145, %v146
    %v148 = vlog2.pop %v147
    %v149 = vmul.f32 %v148, 0.6931472
    %vm150 = vcmask 57344
    %v151 = vsel %vm150, %v149, 0.0
    %152 = vadd.xlane.f32.xlu0 %v151
    %v153 = vpop.xlane.xlu0 %152
    %v154 = vrot.slane %v153, 4
    %v155 = vadd.f32 %v153, %v154
    %v156 = vrot.slane %v155, 2
    %v157 = vadd.f32 %v155, %v156
    %v158 = vrot.slane %v157, 1
    %v159 = vadd.f32 %v157, %v158
    %s160 = vtos %v159
    %s161 = sadd.f32 %s160, %s140
    %s162 = ssub.f32 %s141, %s88
    %s163 = smul.f32 %s162, 0.125
    %s164 = ssub.f32 %s161, %s88
    %s165 = smul.f32 %s164, 0.125
    %s166 = sadd.f32 %s163, %s165
    %s167 = smul.f32 %s166, 0.5
    %s168 = scalar_lea.smem [#allocation8], 0
    %169 = sst [smem:[%s168]] %s167
    // Predicated region
    $region22: #{tpu_custom_call.1} parent=1 // pred_check
      _
    $region23: #{tpu_custom_call.1} parent=1 // pred_check_branch
      %171 = sbr.rel (0) target = $region25
    $region24: #{tpu_custom_call.1} parent=1 // pred_region
      %173 = vsyncadd [#allocation5], 0
      %s175 = sshll.u32 %s3, 4
      %s176 = int_to_ptr.hbm [resolvable:$true] %s175
      %178 = dma.smem_to_hbm [#allocation8], 16, %s176, [#allocation5]
    $region25: #{tpu_custom_call.1} parent=1 // pred_fallthru
      _
    // Predicated region
    $region26: #{tpu_custom_call.1} parent=1 // pred_check
      _
    $region27: #{tpu_custom_call.1} parent=1 // pred_check_branch
      %180 = sbr.rel (0) target = $region29
    $region28: #{tpu_custom_call.1} parent=1 // pred_region
      %182 = dma.done [#allocation5], 16
    $region29: #{tpu_custom_call.1} parent=1 // pred_fallthru
      _
    %183 = sfence
    %184 = vsyncpa [#allocation4], 1
    %185 = vsyncpa [#allocation7], 1
    %186 = vsyncpa [#allocation5], 1

</llo_original>
